<compile_context>
chip_gen: v5e
topology: v5e:2x2
jax: 0.10.0
libtpu: 0.0.40
codegen_flags: <defaults>
</compile_context>

<pallas_src>
import math

import jax
import jax.numpy as jnp
from jax import lax
from jax.experimental import pallas as pl
from jax.experimental.pallas import tpu as pltpu

LN_EPS = 1e-5  # nn.LayerNorm default


def _round_up(a, b):
    return ((a + b - 1) // b) * b


def _embed_kernel(p_ref, w_ref, s_ref, o_ref, acc_ref):
    # p_ref: (tm, tk) bf16 im2col patch tile
    # w_ref: (tk, E) bf16 flattened-weight K-slice
    # s_ref: (3, E)  f32 [conv bias; LN gamma; LN beta]
    # o_ref: (tm, E) output tile
    # acc_ref: (tm, E) f32 accumulator scratch (persists across the K axis)
    kk = pl.program_id(1)

    @pl.when(kk == 0)
    def _init():
        acc_ref[...] = jnp.zeros_like(acc_ref)

    # bf16 x bf16 -> f32 accumulation on the MXU.
    acc_ref[...] += jnp.dot(p_ref[...], w_ref[...],
                            preferred_element_type=jnp.float32)

    @pl.when(kk == pl.num_programs(1) - 1)
    def _finalize():
        y = acc_ref[...] + s_ref[0:1, :]                  # conv bias
        # LayerNorm over embed_dim, all f32.  Two-pass variance (numerically
        # safer than E[y^2]-mu^2); the kernel is mem-bound so it is free.
        mu = jnp.mean(y, axis=-1, keepdims=True)
        var = jnp.mean(jnp.square(y - mu), axis=-1, keepdims=True)
        yn = (y - mu) * lax.rsqrt(var + LN_EPS)
        o_ref[...] = (yn * s_ref[1:2, :] + s_ref[2:3, :]).astype(o_ref.dtype)


def _im2col_3d(x, k, s, p):
    """x: (B, C, D, H, W) -> patches (B, N, k^3*C), built N-major in one pass.

    K ordering is (kd, kh, kw, c) -- tap-major, channel-minor -- so the weight
    must be permuted to match (done in the wrapper; it is tiny).
    """
    B, C, D, H, W = x.shape
    # Channel-last first (cheap: only B*C*D*H*W elements), then pad spatially.
    x_cl = jnp.transpose(x, (0, 2, 3, 4, 1))                      # (B, D, H, W, C)
    xp = jnp.pad(x_cl, ((0, 0), (p, p), (p, p), (p, p), (0, 0)))
    Do = (D + 2 * p - k) // s + 1
    Ho = (H + 2 * p - k) // s + 1
    Wo = (W + 2 * p - k) // s + 1
    cols = []
    for kd in range(k):
        for kh in range(k):
            for kw in range(k):
                cols.append(
                    xp[:, kd:kd + s * Do:s, kh:kh + s * Ho:s, kw:kw + s * Wo:s, :])
    pat = jnp.stack(cols, axis=4)                       # (B, Do, Ho, Wo, k^3, C)
    pat = pat.reshape(B, Do * Ho * Wo, k * k * k * C)   # (B, N, K) -- no big transpose
    return pat, Do, Ho, Wo


def overlap_patch_embed(x, conv_w, conv_b, ln_g, ln_b, patch_size=7, stride=4,
                        row_tile=1024, max_k_block=4096, vmem_limit_bytes=None):
    """Equivalent of OverlapPatchEmbed.forward.  Returns (y, D', H', W')."""
    B, C, D, H, W = x.shape
    E = conv_w.shape[0]
    k, s = patch_size, stride
    p = k // 2

    # bf16 BEFORE patch extraction: halves the bytes of the only large HBM
    # intermediate.  Accumulation stays f32 inside the kernel.
    patches, Do, Ho, Wo = _im2col_3d(x.astype(jnp.bfloat16), k, s, p)
    N = Do * Ho * Wo
    M = B * N
    K = C * k * k * k

    pm = patches.reshape(M, K)
    # Permute the (tiny) weight to the patch K order: (kd, kh, kw, c).
    w2 = jnp.transpose(conv_w, (0, 2, 3, 4, 1)).reshape(E, K).T.astype(jnp.bfloat16)

    # --- K tiling: lane-align; split into blocks only when Kp is large -------
    Kp = _round_up(K, 128)
    if Kp <= max_k_block:
        tk = Kp                         # monolithic K (no accumulator traffic)
    else:
        # Bounds VMEM for deep stages (large C): matters most on v7x (64 MiB
        # physical).  On v5e/v6e prefer raising max_k_block + vmem_limit_bytes.
        tk = max_k_block
        Kp = _round_up(K, tk)
    if Kp != K:
        pm = jnp.pad(pm, ((0, 0), (0, Kp - K)))    # zero cols: contribute 0
        w2 = jnp.pad(w2, ((0, Kp - K), (0, 0)))
    k_steps = Kp // tk

    # --- Row tiling: big tiles, but keep >= 4 grid steps when M allows so the
    # "parallel" row axis can shard across TensorCores (v7x megacore). --------
    tm = min(row_tile, _round_up((M + 3) // 4, 8))
    Mp = _round_up(M, tm)
    if Mp != M:
        pm = jnp.pad(pm, ((0, Mp - M), (0, 0)))    # zero rows: benign, sliced off

    # conv bias / LN gamma / LN beta merged into one constant (3, E) operand.
    params = jnp.stack([conv_b, ln_g, ln_b]).astype(jnp.float32)

    # Weight block index is constant only when K is monolithic.
    if k_steps == 1:
        w_spec = pl.BlockSpec((tk, E), lambda i, kk: (kk, 0),
                              pipeline_mode=pl.Buffered(1))
    else:
        w_spec = pl.BlockSpec((tk, E), lambda i, kk: (kk, 0))

    out = pl.pallas_call(
        _embed_kernel,
        out_shape=jax.ShapeDtypeStruct((Mp, E), x.dtype),
        grid_spec=pltpu.PrefetchScalarGridSpec(
            num_scalar_prefetch=0,
            grid=(Mp // tm, k_steps),
            in_specs=[
                pl.BlockSpec((tm, tk), lambda i, kk: (i, kk)),   # patches tile
                w_spec,                                          # weight K-slice
                pl.BlockSpec((3, E), lambda i, kk: (0, 0),       # bias/gamma/beta
                             pipeline_mode=pl.Buffered(1)),
            ],
            out_specs=pl.BlockSpec((tm, E), lambda i, kk: (i, 0)),
            scratch_shapes=[pltpu.VMEM((tm, E), jnp.float32)],
        ),
        compiler_params=pltpu.CompilerParams(
            dimension_semantics=("parallel", "arbitrary"),
            vmem_limit_bytes=vmem_limit_bytes),
    )(pm, w2, params)

    out = out[:M]                                        # drop padded rows
    return out.reshape(B, N, E), Do, Ho, Wo


def _reference(x, conv_w, conv_b, ln_g, ln_b, k, s, compute_dtype=jnp.float32):
    """Plain-JAX reference mirroring the PyTorch forward (f32 accumulation)."""
    p = k // 2
    prec = lax.Precision.HIGHEST if compute_dtype == jnp.float32 else None
    y = lax.conv_general_dilated(
        x.astype(compute_dtype), conv_w.astype(compute_dtype),
        window_strides=(s, s, s), padding=[(p, p)] * 3,
        dimension_numbers=("NCDHW", "OIDHW", "NCDHW"),
        preferred_element_type=jnp.float32, precision=prec)
    y = y + conv_b.reshape(1, -1, 1, 1, 1)
    B, E, Do, Ho, Wo = y.shape
    y = y.reshape(B, E, -1).transpose(0, 2, 1)           # (B, N, E)
    mu = y.mean(-1, keepdims=True)
    var = ((y - mu) ** 2).mean(-1, keepdims=True)
    y = (y - mu) / jnp.sqrt(var + LN_EPS)
    return y * ln_g + ln_b, Do, Ho, Wo


if __name__ == "__main__":
    # Small config consistent with the module: img_size=(16,16,16),
    # patch_size=7, stride=4, in_chans=4, embed_dim=32, batch=2.
    B, C, D, H, W = 2, 4, 16, 16, 16
    patch_size, stride, embed_dim = 7, 4, 32

    key = jax.random.PRNGKey(0)
    kx, kw = jax.random.split(key)
    x = jax.random.normal(kx, (B, C, D, H, W), dtype=jnp.float32)

    # Conv3d init: normal(0, sqrt(2/fan_out)), fan_out = k^3 * embed_dim; bias 0.
    fan_out = patch_size * patch_size * patch_size * embed_dim
    conv_w = jax.random.normal(
        kw, (embed_dim, C, patch_size, patch_size, patch_size),
        dtype=jnp.float32) * math.sqrt(2.0 / fan_out)
    conv_b = jnp.zeros((embed_dim,), jnp.float32)
    # LayerNorm init: weight=1, bias=0.
    ln_g = jnp.ones((embed_dim,), jnp.float32)
    ln_b = jnp.zeros((embed_dim,), jnp.float32)

    y, Ho, Wo, Lo = overlap_patch_embed(
        x, conv_w, conv_b, ln_g, ln_b, patch_size=patch_size, stride=stride)
    y = jax.block_until_ready(y)

    # Reference matched to the kernel's bf16-operand / f32-accumulation choice.
    y_bf, Ho_r, Wo_r, Lo_r = _reference(
        x, conv_w, conv_b, ln_g, ln_b, patch_size, stride,
        compute_dtype=jnp.bfloat16)
    # Full-f32 reference (module semantics) -- looser tolerance for bf16 operands.
    y_f32, _, _, _ = _reference(
        x, conv_w, conv_b, ln_g, ln_b, patch_size, stride,
        compute_dtype=jnp.float32)

    assert (Ho, Wo, Lo) == (Ho_r, Wo_r, Lo_r)
    assert y.shape == (B, Ho * Wo * Lo, embed_dim)
    assert jnp.allclose(y, y_bf, atol=1e-2, rtol=1e-2)
    assert jnp.allclose(y, y_f32, atol=1e-1, rtol=1e-1)

    print("KERNEL_OK")
</pallas_src>

<mosaic_0001>
module attributes {stable_mosaic.version = 11 : i64} {
  func.func @_embed_kernel(%arg0: i32, %arg1: i32, %arg2: memref<32x1408xbf16, #tpu.memory_space<vmem>>, %arg3: memref<1408x32xbf16, #tpu.memory_space<vmem>>, %arg4: memref<3x32xf32, #tpu.memory_space<vmem>>, %arg5: memref<32x32xf32, #tpu.memory_space<vmem>>, %arg6: memref<32x32xf32, #tpu.memory_space<vmem>>) attributes {dimension_semantics = [#tpu.dimension_semantics<parallel>, #tpu.dimension_semantics<arbitrary>], iteration_bounds = array<i64: 4, 1>, scalar_prefetch = 0 : i64, scratch_operands = 1 : i64, tpu.core_type = #tpu.core_type<tc>, window_params = [{transform_indices = @transform_0, window_bounds = array<i64: 32, 1408>}, {pipeline_mode = #tpu.pipeline_mode<synchronous>, transform_indices = @transform_1, window_bounds = array<i64: 1408, 32>}, {pipeline_mode = #tpu.pipeline_mode<synchronous>, transform_indices = @transform_2, window_bounds = array<i64: 3, 32>}, {transform_indices = @transform_3, window_bounds = array<i64: 32, 32>}]} {
    %c0_i32 = arith.constant 0 : i32
    %0 = arith.cmpi eq, %arg1, %c0_i32 : i32
    %1 = arith.extui %0 : i1 to i32
    %c0_i32_0 = arith.constant 0 : i32
    %2 = arith.cmpi ne, %1, %c0_i32_0 : i32
    scf.if %2 {
      %cst_10 = arith.constant 0.000000e+00 : f32
      %12 = vector.broadcast %cst_10 : f32 to vector<32x32xf32>
      %c0_11 = arith.constant 0 : index
      %c0_12 = arith.constant 0 : index
      %13 = vector.load %arg6[%c0_11, %c0_12] : memref<32x32xf32, #tpu.memory_space<vmem>>, vector<32x32xf32>
      tpu.vector_store %arg6[%c0_11, %c0_12], %12 {strides = array<i32>} : memref<32x32xf32, #tpu.memory_space<vmem>>, vector<32x32xf32>,
    } else {
    }
    %c0 = arith.constant 0 : index
    %c0_1 = arith.constant 0 : index
    %3 = vector.load %arg6[%c0, %c0_1] : memref<32x32xf32, #tpu.memory_space<vmem>>, vector<32x32xf32>
    %c0_2 = arith.constant 0 : index
    %c0_3 = arith.constant 0 : index
    %4 = vector.load %arg2[%c0_2, %c0_3] : memref<32x1408xbf16, #tpu.memory_space<vmem>>, vector<32x1408xbf16>
    %c0_4 = arith.constant 0 : index
    %c0_5 = arith.constant 0 : index
    %5 = vector.load %arg3[%c0_4, %c0_5] : memref<1408x32xbf16, #tpu.memory_space<vmem>>, vector<1408x32xbf16>
    %cst = arith.constant dense<0.000000e+00> : vector<32x32xf32>
    %6 = tpu.matmul %4, %5, %cst {dimension_numbers = #tpu.dot_dimension_numbers<[1], [0], [0], [1], [0, 0, 1, 1], [], []>} : vector<32x1408xbf16>, vector<1408x32xbf16>, vector<32x32xf32> -> vector<32x32xf32>
    %7 = arith.addf %3, %6 : vector<32x32xf32>
    %c0_6 = arith.constant 0 : index
    %c0_7 = arith.constant 0 : index
    %8 = vector.load %arg6[%c0_6, %c0_7] : memref<32x32xf32, #tpu.memory_space<vmem>>, vector<32x32xf32>
    tpu.vector_store %arg6[%c0_6, %c0_7], %7 {strides = array<i32>} : memref<32x32xf32, #tpu.memory_space<vmem>>, vector<32x32xf32>,
    %c0_i32_8 = arith.constant 0 : i32
    %9 = arith.cmpi eq, %arg1, %c0_i32_8 : i32
    %10 = arith.extui %9 : i1 to i32
    %c0_i32_9 = arith.constant 0 : i32
    %11 = arith.cmpi ne, %10, %c0_i32_9 : i32
    scf.if %11 {
      %c0_10 = arith.constant 0 : index
      %c0_11 = arith.constant 0 : index
      %12 = vector.load %arg6[%c0_10, %c0_11] : memref<32x32xf32, #tpu.memory_space<vmem>>, vector<32x32xf32>
      %c0_12 = arith.constant 0 : index
      %c0_13 = arith.constant 0 : index
      %13 = vector.load %arg4[%c0_12, %c0_13] : memref<3x32xf32, #tpu.memory_space<vmem>>, vector<1x32xf32>
      %14 = vector.broadcast %13 : vector<1x32xf32> to vector<32x32xf32>
      %15 = arith.addf %12, %14 : vector<32x32xf32>
      %cst_14 = arith.constant dense<0.000000e+00> : vector<32xf32>
      %16 = vector.multi_reduction <add>, %15, %cst_14 [1] : vector<32x32xf32> to vector<32xf32>
      %17 = vector.shape_cast %16 : vector<32xf32> to vector<32x1xf32>
      %cst_15 = arith.constant 3.200000e+01 : f32
      %18 = vector.broadcast %cst_15 : f32 to vector<32x1xf32>
      %19 = arith.divf %17, %18 : vector<32x1xf32>
      %20 = vector.broadcast %19 : vector<32x1xf32> to vector<32x32xf32>
      %21 = arith.subf %15, %20 : vector<32x32xf32>
      %22 = arith.mulf %21, %21 : vector<32x32xf32>
      %cst_16 = arith.constant dense<0.000000e+00> : vector<32xf32>
      %23 = vector.multi_reduction <add>, %22, %cst_16 [1] : vector<32x32xf32> to vector<32xf32>
      %24 = vector.shape_cast %23 : vector<32xf32> to vector<32x1xf32>
      %cst_17 = arith.constant 3.200000e+01 : f32
      %25 = vector.broadcast %cst_17 : f32 to vector<32x1xf32>
      %26 = arith.divf %24, %25 : vector<32x1xf32>
      %27 = vector.broadcast %19 : vector<32x1xf32> to vector<32x32xf32>
      %28 = arith.subf %15, %27 : vector<32x32xf32>
      %cst_18 = arith.constant 9.99999974E-6 : f32
      %29 = vector.broadcast %cst_18 : f32 to vector<32x1xf32>
      %30 = arith.addf %26, %29 : vector<32x1xf32>
      %31 = math.rsqrt %30 : vector<32x1xf32>
      %32 = vector.broadcast %31 : vector<32x1xf32> to vector<32x32xf32>
      %33 = arith.mulf %28, %32 : vector<32x32xf32>
      %c1 = arith.constant 1 : index
      %c0_19 = arith.constant 0 : index
      %34 = vector.load %arg4[%c1, %c0_19] : memref<3x32xf32, #tpu.memory_space<vmem>>, vector<1x32xf32>
      %35 = vector.broadcast %34 : vector<1x32xf32> to vector<32x32xf32>
      %36 = arith.mulf %33, %35 : vector<32x32xf32>
      %c2 = arith.constant 2 : index
      %c0_20 = arith.constant 0 : index
      %37 = vector.load %arg4[%c2, %c0_20] : memref<3x32xf32, #tpu.memory_space<vmem>>, vector<1x32xf32>
      %38 = vector.broadcast %37 : vector<1x32xf32> to vector<32x32xf32>
      %39 = arith.addf %36, %38 : vector<32x32xf32>
      %c0_21 = arith.constant 0 : index
      %c0_22 = arith.constant 0 : index
      %40 = vector.load %arg5[%c0_21, %c0_22] : memref<32x32xf32, #tpu.memory_space<vmem>>, vector<32x32xf32>
      tpu.vector_store %arg5[%c0_21, %c0_22], %39 {strides = array<i32>} : memref<32x32xf32, #tpu.memory_space<vmem>>, vector<32x32xf32>,
    } else {
    }
    return
  }
  func.func @transform_0(%arg0: i32, %arg1: i32) -> (i32, i32) {
    %c0_i32 = arith.constant 0 : i32
    return %arg0, %arg1 : i32, i32
  }
  func.func @transform_1(%arg0: i32, %arg1: i32) -> (i32, i32) {
    %c0_i32 = arith.constant 0 : i32
    %c0_i32_0 = arith.constant 0 : i32
    return %arg1, %c0_i32 : i32, i32
  }
  func.func @transform_2(%arg0: i32, %arg1: i32) -> (i32, i32) {
    %c0_i32 = arith.constant 0 : i32
    %c0_i32_0 = arith.constant 0 : i32
    %c0_i32_1 = arith.constant 0 : i32
    return %c0_i32, %c0_i32_0 : i32, i32
  }
  func.func @transform_3(%arg0: i32, %arg1: i32) -> (i32, i32) {
    %c0_i32 = arith.constant 0 : i32
    %c0_i32_0 = arith.constant 0 : i32
    return %arg0, %c0_i32 : i32, i32
  }
}

</mosaic_0001>

<llo_original>
// kernel: tpu_custom_call.1
$region0: #{tpu_custom_call.1}
  #allocation0 [shape = 'u32[]', space=smem, size = 0x4, offset = 0x4, fixed_abs, tag = 'smem constant byte address 0x4 - core index']
  #allocation1 [shape = 'u32[72,128]{1,0:T(1,128)}', space=vmem, size = 0x9000, scoped, tag = 'internal scratch']
  #allocation2 [shape = 'f32[32,32]{1,0:T(8,128)}', space=vmem, size = 0x4000, scoped, tag = 'scratch operand']
  %s0 = inlined_call_operand.vmem [shape: bf16[128,1408], index: 0, kind: input, shape index: {}]
  %s1 = inlined_call_operand.vmem [shape: bf16[1408,32], index: 1, kind: input, shape index: {}]
  %s2 = inlined_call_operand.vmem [shape: f32[3,32], index: 2, kind: input, shape index: {}]
  %s3 = inlined_call_operand.vmem [shape: f32[128,32], index: 3, kind: output, shape index: {}]
  %s4 = sld [smem:[#allocation0]]
  $region53: #{tpu_custom_call.1} parent=0
    _
  %s6 = ssub.s32 1, %s4
  %s7 = scalar_select 0, %s6, %s4
  loop: start=0, step=1, limit=6
  $region2: #{tpu_custom_call.1} parent=0 // loop_pre_header
    _
  $region3: #{tpu_custom_call.1} parent=0 // loop_header
    %s9 = sphi 0, %s13
    %p10 = scmp.ge.s32.totalorder %s9, 6
    %s16 = sphi 0, %s28
    %s17 = sphi 0, %s24
    %s18 = sphi 0, %s16
    %s19 = sphi 0, %s17
    %s20 = sphi 0, %s18
    %s21 = sphi 0, %s19
    %s33 = sphi 0, %s35
    %s36 = sphi 0, %s33
    %s37 = sphi 0, %s36
    %s53 = sphi 0, %s37
    %s59 = sphi 0, %s61
    %s62 = sphi 0, %s59
    %s63 = sphi 0, %s62
    %s79 = sphi 0, %s63
    %s83 = sphi 0, %s83
    %s85 = sphi 0, %s83
    %s86 = sphi 0, %s85
    %s100 = sphi 0, %s86
    %s106 = sphi 0, %s108
    %s109 = sphi 0, %s106
    %s110 = sphi 0, %s109
    %s126 = sphi 0, %s110
  $region4: #{tpu_custom_call.1} parent=0 // loop_header_branch
    %12 = sbr.rel (%p10) target = $region8
  $region5: #{tpu_custom_call.1} parent=0 // loop_body
    %s14 = ssub.s32 %s9, 1
    %s15 = ssub.s32 %s9, 2
    %s22 = sadd.s32 1, %s17
    %p23 = scmp.ge.s32.totalorder %s22, 1
    %s24 = scalar_select %p23, 0, %s22
    %s25 = sadd.s32 1, %s16
    %s26 = scalar_select %p23, %s25, %s16
    %p27 = scmp.ge.s32.totalorder %s26, 4
    %s28 = scalar_select %p27, 0, %s26
    %s29 = ssub.s32 %s16, %s28
    %s30 = ssub.s32 %s17, %s24
    %s31 = sor.u32 %s29, %s30
    %p32 = scmp.eq.s32.totalorder %s31, 0
    %s34 = sadd.s32 %s33, 1
    %s35 = scalar_select %p32, %s33, %s34
    %p38 = pneg %p32
    %p39 = scmp.eq.s32.totalorder %s9, 3
    %p40 = por %p38, %p39
    %p41 = scmp.ne.s32.totalorder %s33, %s36
    %p42 = scmp.eq.s32.totalorder %s9, 0
    %p43 = por %p41, %p42
    %p44 = scmp.ne.s32.totalorder %s33, %s36
    %p45 = scmp.eq.s32.totalorder %s14, 3
    %p46 = por %p44, %p45
    %p47 = scmp.ne.s32.totalorder %s36, %s37
    %p48 = scmp.eq.s32.totalorder %s14, 0
    %p49 = por %p47, %p48
    %p50 = scmp.ne.s32.totalorder %s36, %s37
    %p51 = scmp.eq.s32.totalorder %s15, 3
    %p52 = por %p50, %p51
    %p54 = scmp.ne.s32.totalorder %s37, %s53
    %p55 = scmp.eq.s32.totalorder %s15, 0
    %p56 = por %p54, %p55
    %s57 = ssub.s32 %s17, %s24
    %p58 = scmp.eq.s32.totalorder %s57, 0
    %s60 = sadd.s32 %s59, 1
    %s61 = scalar_select %p58, %s59, %s60
    %p64 = pneg %p58
    %p65 = scmp.eq.s32.totalorder %s9, 3
    %p66 = por %p64, %p65
    %p67 = scmp.ne.s32.totalorder %s59, %s62
    %p68 = scmp.eq.s32.totalorder %s9, 0
    %p69 = por %p67, %p68
    %p70 = scmp.ne.s32.totalorder %s59, %s62
    %p71 = scmp.eq.s32.totalorder %s14, 3
    %p72 = por %p70, %p71
    %p73 = scmp.ne.s32.totalorder %s62, %s63
    %p74 = scmp.eq.s32.totalorder %s14, 0
    %p75 = por %p73, %p74
    %p76 = scmp.ne.s32.totalorder %s62, %s63
    %p77 = scmp.eq.s32.totalorder %s15, 3
    %p78 = por %p76, %p77
    %p80 = scmp.ne.s32.totalorder %s63, %s79
    %p81 = scmp.eq.s32.totalorder %s15, 0
    %p82 = por %p80, %p81
    %s84 = sadd.s32 %s83, 1
    %p87 = scmp.eq.s32.totalorder %s9, 3
    %p88 = scmp.ne.s32.totalorder %s83, %s85
    %p89 = scmp.eq.s32.totalorder %s9, 0
    %p90 = por %p88, %p89
    %p91 = scmp.ne.s32.totalorder %s83, %s85
    %p92 = scmp.eq.s32.totalorder %s14, 3
    %p93 = por %p91, %p92
    %p94 = scmp.ne.s32.totalorder %s85, %s86
    %p95 = scmp.eq.s32.totalorder %s14, 0
    %p96 = por %p94, %p95
    %p97 = scmp.ne.s32.totalorder %s85, %s86
    %p98 = scmp.eq.s32.totalorder %s15, 3
    %p99 = por %p97, %p98
    %p101 = scmp.ne.s32.totalorder %s86, %s100
    %p102 = scmp.eq.s32.totalorder %s15, 0
    %p103 = por %p101, %p102
    %s104 = ssub.s32 %s16, %s28
    %p105 = scmp.eq.s32.totalorder %s104, 0
    %s107 = sadd.s32 %s106, 1
    %s108 = scalar_select %p105, %s106, %s107
    %p111 = pneg %p105
    %p112 = scmp.eq.s32.totalorder %s9, 3
    %p113 = por %p111, %p112
    %p114 = scmp.ne.s32.totalorder %s106, %s109
    %p115 = scmp.eq.s32.totalorder %s9, 0
    %p116 = por %p114, %p115
    %p117 = scmp.ne.s32.totalorder %s106, %s109
    %p118 = scmp.eq.s32.totalorder %s14, 3
    %p119 = por %p117, %p118
    %p120 = scmp.ne.s32.totalorder %s109, %s110
    %p121 = scmp.eq.s32.totalorder %s14, 0
    %p122 = por %p120, %p121
    %p123 = scmp.ne.s32.totalorder %s109, %s110
    %p124 = scmp.eq.s32.totalorder %s15, 3
    %p125 = por %p123, %p124
    %p127 = scmp.ne.s32.totalorder %s110, %s126
    %p128 = scmp.eq.s32.totalorder %s15, 0
    %p129 = por %p127, %p128
    %p130 = scmp.le.s32.totalorder 1, %s9
    %p131 = scmp.lt.s32.totalorder %s9, 5
    %p132 = pnand %p130, %p131
    %p133 = pneg %p132
    // Predicated region
    $region9: #{tpu_custom_call.1} parent=5 // pred_check
      _
    $region10: #{tpu_custom_call.1} parent=5 // pred_check_branch
      %135 = sbr.rel (%p132) target = $region12
    $region11: #{tpu_custom_call.1} parent=5 // pred_region
      %s136 = ssub.s32 %s9, 1
      // Predicated region
      $region13: #{tpu_custom_call.1} parent=11 // pred_check
        %p137 = pneg %p75
      $region14: #{tpu_custom_call.1} parent=11 // pred_check_branch
        %139 = sbr.rel (%p137) target = $region16
      $region15: #{tpu_custom_call.1} parent=11 // pred_region
        %s140 = smul.u32 176, %s19
        %p141 = scmp.lt.s32.totalorder %s140, 175
        %s142 = scalar_select %p141, %s140, 175
        %s143 = smul.addr %s142, 4
        %s144 = scalar_lea.vmem %s1, %s143
        %s145 = smul.u32 176, %s19
      $region16: #{tpu_custom_call.1} parent=11 // pred_fallthru
        _
      // Predicated region
      $region17: #{tpu_custom_call.1} parent=11 // pred_check
        %p146 = pneg %p96
      $region18: #{tpu_custom_call.1} parent=11 // pred_check_branch
        %148 = sbr.rel (%p146) target = $region20
      $region19: #{tpu_custom_call.1} parent=11 // pred_region
        _
      $region20: #{tpu_custom_call.1} parent=11 // pred_fallthru
        _
    $region12: #{tpu_custom_call.1} parent=5 // pred_fallthru
      _
    %p149 = scmp.lt.s32.totalorder %s9, 4
    // Predicated region
    $region21: #{tpu_custom_call.1} parent=5 // pred_check
      %p150 = pneg %p149
    $region22: #{tpu_custom_call.1} parent=5 // pred_check_branch
      %152 = sbr.rel (%p150) target = $region24
    $region23: #{tpu_custom_call.1} parent=5 // pred_region
      // Predicated region
      $region25: #{tpu_custom_call.1} parent=23 // pred_check
        %p153 = pneg %p43
      $region26: #{tpu_custom_call.1} parent=23 // pred_check_branch
        %155 = sbr.rel (%p153) target = $region28
      $region27: #{tpu_custom_call.1} parent=23 // pred_region
        %s156 = smul.u32 4, %s16
        %s157 = smul.u32 11, %s17
        %p158 = scmp.lt.s32.totalorder %s156, 15
        %s159 = scalar_select %p158, %s156, 15
        %p160 = scmp.lt.s32.totalorder %s157, 10
        %s161 = scalar_select %p160, %s157, 10
        %s162 = smul.addr %s159, 11
        %s163 = sadd.s32 %s161, %s162
        %s164 = smul.addr %s163, 4
        %s165 = scalar_lea.vmem %s0, %s164
        %s166 = smul.u32 4, %s16
        %s167 = smul.u32 11, %s17
      $region28: #{tpu_custom_call.1} parent=23 // pred_fallthru
        _
    $region24: #{tpu_custom_call.1} parent=5 // pred_fallthru
      _
    %p168 = scmp.le.s32.totalorder 1, %s9
    %p169 = scmp.lt.s32.totalorder %s9, 5
    %p170 = pnand %p168, %p169
    %p171 = pneg %p170
    // Predicated region
    $region29: #{tpu_custom_call.1} parent=5 // pred_check
      _
    $region30: #{tpu_custom_call.1} parent=5 // pred_check_branch
      %173 = sbr.rel (%p170) target = $region32
    $region31: #{tpu_custom_call.1} parent=5 // pred_region
      %s174 = ssub.s32 %s9, 1
      %s175 = smul.u32 4, %s18
      %s176 = smul.u32 11, %s19
      %p177 = scmp.lt.s32.totalorder %s175, 15
      %s178 = scalar_select %p177, %s175, 15
      %p179 = scmp.lt.s32.totalorder %s176, 10
      %s180 = scalar_select %p179, %s176, 10
      %s181 = smul.addr %s178, 11
      %s182 = sadd.s32 %s180, %s181
      %s183 = smul.addr %s182, 4
      %s184 = scalar_lea.vmem %s0, %s183
      %p185 = pneg %p49
      %p186 = pneg %p46
      %s187 = smul.u32 176, %s19
      %p188 = scmp.lt.s32.totalorder %s187, 175
      %s189 = scalar_select %p188, %s187, 175
      %s190 = smul.addr %s189, 4
      %s191 = scalar_lea.vmem %s1, %s190
      %p192 = pneg %p75
      %p193 = pneg %p72
      %p194 = pneg %p96
      %p195 = pneg %p93
      %p196 = pneg %p122
      %p197 = pneg %p119
      %s198 = smul.u32 4, %s18
      %p199 = scmp.lt.s32.totalorder %s198, 15
      %s200 = scalar_select %p199, %s198, 15
      %s201 = smul.addr %s200, 8
      %s202 = scalar_lea.vmem %s3, %s201
      %s203 = smul.u32 4, %s18
      %s204 = smul.u32 11, %s19
      %p205 = scmp.lt.s32.totalorder %s203, 15
      %s206 = scalar_select %p205, %s203, 15
      %p207 = scmp.lt.s32.totalorder %s204, 10
      %s208 = scalar_select %p207, %s204, 10
      %s209 = smul.addr %s206, 11
      %s210 = sadd.s32 %s208, %s209
      %s211 = smul.addr %s210, 4
      %s212 = scalar_lea.vmem %s0, %s211
      %s213 = smul.u32 4, %s18
      %s214 = smul.u32 11, %s19
      %s215 = smul.u32 176, %s19
      %p216 = scmp.lt.s32.totalorder %s215, 175
      %s217 = scalar_select %p216, %s215, 175
      %s218 = smul.addr %s217, 4
      %s219 = scalar_lea.vmem %s1, %s218
      %s220 = smul.u32 176, %s19
      %s221 = smul.u32 4, %s18
      %p222 = scmp.lt.s32.totalorder %s221, 15
      %s223 = scalar_select %p222, %s221, 15
      %s224 = smul.addr %s223, 8
      %s225 = scalar_lea.vmem %s3, %s224
      %s226 = smul.u32 4, %s18
      %p227 = scmp.eq.s32.totalorder %s19, 0
      // Predicated region
      $region33: #{tpu_custom_call.1} parent=31 // pred_check
        %p228 = pneg %p227
      $region34: #{tpu_custom_call.1} parent=31 // pred_check_branch
        %230 = sbr.rel (%p228) target = $region36
      $region35: #{tpu_custom_call.1} parent=31 // pred_region
        %vm231 = vcmask 261120
        %232 = vst.msk [vmem:[#allocation2] sm:$0xff] %vm231, 0.0
        %233 = vst.msk [vmem:[#allocation2 + $0x8] sm:$0xff] %vm231, 0.0
        %234 = vst.msk [vmem:[#allocation2 + $0x10] sm:$0xff] %vm231, 0.0
        %235 = vst.msk [vmem:[#allocation2 + $0x18] sm:$0xff] %vm231, 0.0
      $region36: #{tpu_custom_call.1} parent=31 // pred_fallthru
        _
      %v236 = vld [vmem:[#allocation2] sm:$0xff]
      %v237 = vld [vmem:[#allocation2 + $0x8] sm:$0xff]
      %v238 = vld [vmem:[#allocation2 + $0x10] sm:$0xff]
      %v239 = vld [vmem:[#allocation2 + $0x18] sm:$0xff]
      %v240 = vld [vmem:[%s212] sm:$0xff]
      %v241 = vld [vmem:[%s212 + $0x8] sm:$0xff]
      %v242 = vld [vmem:[%s212 + $0x10] sm:$0xff]
      %v243 = vld [vmem:[%s212 + $0x18] sm:$0xff]
      %v244 = vld [vmem:[%s212 + $0x20] sm:$0xff]
      %v245 = vld [vmem:[%s212 + $0x28] sm:$0xf]
      %v246 = vld [vmem:[%s212 + $0x2c] sm:$0xff]
      %v247 = vld [vmem:[%s212 + $0x34] sm:$0xff]
      %v248 = vld [vmem:[%s212 + $0x3c] sm:$0xff]
      %v249 = vld [vmem:[%s212 + $0x44] sm:$0xff]
      %v250 = vld [vmem:[%s212 + $0x4c] sm:$0xff]
      %v251 = vld [vmem:[%s212 + $0x54] sm:$0xf]
      %v252 = vld [vmem:[%s212 + $0x58] sm:$0xff]
      %v253 = vld [vmem:[%s212 + $0x60] sm:$0xff]
      %v254 = vld [vmem:[%s212 + $0x68] sm:$0xff]
      %v255 = vld [vmem:[%s212 + $0x70] sm:$0xff]
      %v256 = vld [vmem:[%s212 + $0x78] sm:$0xff]
      %v257 = vld [vmem:[%s212 + $0x80] sm:$0xf]
      %v258 = vld [vmem:[%s212 + $0x84] sm:$0xff]
      %v259 = vld [vmem:[%s212 + $0x8c] sm:$0xff]
      %v260 = vld [vmem:[%s212 + $0x94] sm:$0xff]
      %v261 = vld [vmem:[%s212 + $0x9c] sm:$0xff]
      %v262 = vld [vmem:[%s212 + $0xa4] sm:$0xff]
      %v263 = vld [vmem:[%s212 + $0xac] sm:$0xf]
      %v264 = vld [vmem:[%s219] sm:$0xf]
      %v265 = vld [vmem:[%s219 + $0x4] sm:$0xf]
      %v266 = vld [vmem:[%s219 + $0x8] sm:$0xf]
      %v267 = vld [vmem:[%s219 + $0xc] sm:$0xf]
      %v268 = vld [vmem:[%s219 + $0x10] sm:$0xf]
      %v269 = vld [vmem:[%s219 + $0x14] sm:$0xf]
      %v270 = vld [vmem:[%s219 + $0x18] sm:$0xf]
      %v271 = vld [vmem:[%s219 + $0x1c] sm:$0xf]
      %v272 = vld [vmem:[%s219 + $0x20] sm:$0xf]
      %v273 = vld [vmem:[%s219 + $0x24] sm:$0xf]
      %v274 = vld [vmem:[%s219 + $0x28] sm:$0xf]
      %v275 = vld [vmem:[%s219 + $0x2c] sm:$0xf]
      %v276 = vld [vmem:[%s219 + $0x30] sm:$0xf]
      %v277 = vld [vmem:[%s219 + $0x34] sm:$0xf]
      %v278 = vld [vmem:[%s219 + $0x38] sm:$0xf]
      %v279 = vld [vmem:[%s219 + $0x3c] sm:$0xf]
      %v280 = vld [vmem:[%s219 + $0x40] sm:$0xf]
      %v281 = vld [vmem:[%s219 + $0x44] sm:$0xf]
      %v282 = vld [vmem:[%s219 + $0x48] sm:$0xf]
      %v283 = vld [vmem:[%s219 + $0x4c] sm:$0xf]
      %v284 = vld [vmem:[%s219 + $0x50] sm:$0xf]
      %v285 = vld [vmem:[%s219 + $0x54] sm:$0xf]
      %v286 = vld [vmem:[%s219 + $0x58] sm:$0xf]
      %v287 = vld [vmem:[%s219 + $0x5c] sm:$0xf]
      %v288 = vld [vmem:[%s219 + $0x60] sm:$0xf]
      %v289 = vld [vmem:[%s219 + $0x64] sm:$0xf]
      %v290 = vld [vmem:[%s219 + $0x68] sm:$0xf]
      %v291 = vld [vmem:[%s219 + $0x6c] sm:$0xf]
      %v292 = vld [vmem:[%s219 + $0x70] sm:$0xf]
      %v293 = vld [vmem:[%s219 + $0x74] sm:$0xf]
      %v294 = vld [vmem:[%s219 + $0x78] sm:$0xf]
      %v295 = vld [vmem:[%s219 + $0x7c] sm:$0xf]
      %v296 = vld [vmem:[%s219 + $0x80] sm:$0xf]
      %v297 = vld [vmem:[%s219 + $0x84] sm:$0xf]
      %v298 = vld [vmem:[%s219 + $0x88] sm:$0xf]
      %v299 = vld [vmem:[%s219 + $0x8c] sm:$0xf]
      %v300 = vld [vmem:[%s219 + $0x90] sm:$0xf]
      %v301 = vld [vmem:[%s219 + $0x94] sm:$0xf]
      %v302 = vld [vmem:[%s219 + $0x98] sm:$0xf]
      %v303 = vld [vmem:[%s219 + $0x9c] sm:$0xf]
      %v304 = vld [vmem:[%s219 + $0xa0] sm:$0xf]
      %v305 = vld [vmem:[%s219 + $0xa4] sm:$0xf]
      %v306 = vld [vmem:[%s219 + $0xa8] sm:$0xf]
      %v307 = vld [vmem:[%s219 + $0xac] sm:$0xf]
      %v308 = vld [vmem:[%s219 + $0xb0] sm:$0xf]
      %v309 = vld [vmem:[%s219 + $0xb4] sm:$0xf]
      %v310 = vld [vmem:[%s219 + $0xb8] sm:$0xf]
      %v311 = vld [vmem:[%s219 + $0xbc] sm:$0xf]
      %v312 = vld [vmem:[%s219 + $0xc0] sm:$0xf]
      %v313 = vld [vmem:[%s219 + $0xc4] sm:$0xf]
      %v314 = vld [vmem:[%s219 + $0xc8] sm:$0xf]
      %v315 = vld [vmem:[%s219 + $0xcc] sm:$0xf]
      %v316 = vld [vmem:[%s219 + $0xd0] sm:$0xf]
      %v317 = vld [vmem:[%s219 + $0xd4] sm:$0xf]
      %v318 = vld [vmem:[%s219 + $0xd8] sm:$0xf]
      %v319 = vld [vmem:[%s219 + $0xdc] sm:$0xf]
      %v320 = vld [vmem:[%s219 + $0xe0] sm:$0xf]
      %v321 = vld [vmem:[%s219 + $0xe4] sm:$0xf]
      %v322 = vld [vmem:[%s219 + $0xe8] sm:$0xf]
      %v323 = vld [vmem:[%s219 + $0xec] sm:$0xf]
      %v324 = vld [vmem:[%s219 + $0xf0] sm:$0xf]
      %v325 = vld [vmem:[%s219 + $0xf4] sm:$0xf]
      %v326 = vld [vmem:[%s219 + $0xf8] sm:$0xf]
      %v327 = vld [vmem:[%s219 + $0xfc] sm:$0xf]
      %v328 = vld [vmem:[%s219 + $0x100] sm:$0xf]
      %v329 = vld [vmem:[%s219 + $0x104] sm:$0xf]
      %v330 = vld [vmem:[%s219 + $0x108] sm:$0xf]
      %v331 = vld [vmem:[%s219 + $0x10c] sm:$0xf]
      %v332 = vld [vmem:[%s219 + $0x110] sm:$0xf]
      %v333 = vld [vmem:[%s219 + $0x114] sm:$0xf]
      %v334 = vld [vmem:[%s219 + $0x118] sm:$0xf]
      %v335 = vld [vmem:[%s219 + $0x11c] sm:$0xf]
      %v336 = vld [vmem:[%s219 + $0x120] sm:$0xf]
      %v337 = vld [vmem:[%s219 + $0x124] sm:$0xf]
      %v338 = vld [vmem:[%s219 + $0x128] sm:$0xf]
      %v339 = vld [vmem:[%s219 + $0x12c] sm:$0xf]
      %v340 = vld [vmem:[%s219 + $0x130] sm:$0xf]
      %v341 = vld [vmem:[%s219 + $0x134] sm:$0xf]
      %v342 = vld [vmem:[%s219 + $0x138] sm:$0xf]
      %v343 = vld [vmem:[%s219 + $0x13c] sm:$0xf]
      %v344 = vld [vmem:[%s219 + $0x140] sm:$0xf]
      %v345 = vld [vmem:[%s219 + $0x144] sm:$0xf]
      %v346 = vld [vmem:[%s219 + $0x148] sm:$0xf]
      %v347 = vld [vmem:[%s219 + $0x14c] sm:$0xf]
      %v348 = vld [vmem:[%s219 + $0x150] sm:$0xf]
      %v349 = vld [vmem:[%s219 + $0x154] sm:$0xf]
      %v350 = vld [vmem:[%s219 + $0x158] sm:$0xf]
      %v351 = vld [vmem:[%s219 + $0x15c] sm:$0xf]
      %v352 = vld [vmem:[%s219 + $0x160] sm:$0xf]
      %v353 = vld [vmem:[%s219 + $0x164] sm:$0xf]
      %v354 = vld [vmem:[%s219 + $0x168] sm:$0xf]
      %v355 = vld [vmem:[%s219 + $0x16c] sm:$0xf]
      %v356 = vld [vmem:[%s219 + $0x170] sm:$0xf]
      %v357 = vld [vmem:[%s219 + $0x174] sm:$0xf]
      %v358 = vld [vmem:[%s219 + $0x178] sm:$0xf]
      %v359 = vld [vmem:[%s219 + $0x17c] sm:$0xf]
      %v360 = vld [vmem:[%s219 + $0x180] sm:$0xf]
      %v361 = vld [vmem:[%s219 + $0x184] sm:$0xf]
      %v362 = vld [vmem:[%s219 + $0x188] sm:$0xf]
      %v363 = vld [vmem:[%s219 + $0x18c] sm:$0xf]
      %v364 = vld [vmem:[%s219 + $0x190] sm:$0xf]
      %v365 = vld [vmem:[%s219 + $0x194] sm:$0xf]
      %v366 = vld [vmem:[%s219 + $0x198] sm:$0xf]
      %v367 = vld [vmem:[%s219 + $0x19c] sm:$0xf]
      %v368 = vld [vmem:[%s219 + $0x1a0] sm:$0xf]
      %v369 = vld [vmem:[%s219 + $0x1a4] sm:$0xf]
      %v370 = vld [vmem:[%s219 + $0x1a8] sm:$0xf]
      %v371 = vld [vmem:[%s219 + $0x1ac] sm:$0xf]
      %v372 = vld [vmem:[%s219 + $0x1b0] sm:$0xf]
      %v373 = vld [vmem:[%s219 + $0x1b4] sm:$0xf]
      %v374 = vld [vmem:[%s219 + $0x1b8] sm:$0xf]
      %v375 = vld [vmem:[%s219 + $0x1bc] sm:$0xf]
      %v376 = vld [vmem:[%s219 + $0x1c0] sm:$0xf]
      %v377 = vld [vmem:[%s219 + $0x1c4] sm:$0xf]
      %v378 = vld [vmem:[%s219 + $0x1c8] sm:$0xf]
      %v379 = vld [vmem:[%s219 + $0x1cc] sm:$0xf]
      %v380 = vld [vmem:[%s219 + $0x1d0] sm:$0xf]
      %v381 = vld [vmem:[%s219 + $0x1d4] sm:$0xf]
      %v382 = vld [vmem:[%s219 + $0x1d8] sm:$0xf]
      %v383 = vld [vmem:[%s219 + $0x1dc] sm:$0xf]
      %v384 = vld [vmem:[%s219 + $0x1e0] sm:$0xf]
      %v385 = vld [vmem:[%s219 + $0x1e4] sm:$0xf]
      %v386 = vld [vmem:[%s219 + $0x1e8] sm:$0xf]
      %v387 = vld [vmem:[%s219 + $0x1ec] sm:$0xf]
      %v388 = vld [vmem:[%s219 + $0x1f0] sm:$0xf]
      %v389 = vld [vmem:[%s219 + $0x1f4] sm:$0xf]
      %v390 = vld [vmem:[%s219 + $0x1f8] sm:$0xf]
      %v391 = vld [vmem:[%s219 + $0x1fc] sm:$0xf]
      %v392 = vld [vmem:[%s219 + $0x200] sm:$0xf]
      %v393 = vld [vmem:[%s219 + $0x204] sm:$0xf]
      %v394 = vld [vmem:[%s219 + $0x208] sm:$0xf]
      %v395 = vld [vmem:[%s219 + $0x20c] sm:$0xf]
      %v396 = vld [vmem:[%s219 + $0x210] sm:$0xf]
      %v397 = vld [vmem:[%s219 + $0x214] sm:$0xf]
      %v398 = vld [vmem:[%s219 + $0x218] sm:$0xf]
      %v399 = vld [vmem:[%s219 + $0x21c] sm:$0xf]
      %v400 = vld [vmem:[%s219 + $0x220] sm:$0xf]
      %v401 = vld [vmem:[%s219 + $0x224] sm:$0xf]
      %v402 = vld [vmem:[%s219 + $0x228] sm:$0xf]
      %v403 = vld [vmem:[%s219 + $0x22c] sm:$0xf]
      %v404 = vld [vmem:[%s219 + $0x230] sm:$0xf]
      %v405 = vld [vmem:[%s219 + $0x234] sm:$0xf]
      %v406 = vld [vmem:[%s219 + $0x238] sm:$0xf]
      %v407 = vld [vmem:[%s219 + $0x23c] sm:$0xf]
      %v408 = vld [vmem:[%s219 + $0x240] sm:$0xf]
      %v409 = vld [vmem:[%s219 + $0x244] sm:$0xf]
      %v410 = vld [vmem:[%s219 + $0x248] sm:$0xf]
      %v411 = vld [vmem:[%s219 + $0x24c] sm:$0xf]
      %v412 = vld [vmem:[%s219 + $0x250] sm:$0xf]
      %v413 = vld [vmem:[%s219 + $0x254] sm:$0xf]
      %v414 = vld [vmem:[%s219 + $0x258] sm:$0xf]
      %v415 = vld [vmem:[%s219 + $0x25c] sm:$0xf]
      %v416 = vld [vmem:[%s219 + $0x260] sm:$0xf]
      %v417 = vld [vmem:[%s219 + $0x264] sm:$0xf]
      %v418 = vld [vmem:[%s219 + $0x268] sm:$0xf]
      %v419 = vld [vmem:[%s219 + $0x26c] sm:$0xf]
      %v420 = vld [vmem:[%s219 + $0x270] sm:$0xf]
      %v421 = vld [vmem:[%s219 + $0x274] sm:$0xf]
      %v422 = vld [vmem:[%s219 + $0x278] sm:$0xf]
      %v423 = vld [vmem:[%s219 + $0x27c] sm:$0xf]
      %v424 = vld [vmem:[%s219 + $0x280] sm:$0xf]
      %v425 = vld [vmem:[%s219 + $0x284] sm:$0xf]
      %v426 = vld [vmem:[%s219 + $0x288] sm:$0xf]
      %v427 = vld [vmem:[%s219 + $0x28c] sm:$0xf]
      %v428 = vld [vmem:[%s219 + $0x290] sm:$0xf]
      %v429 = vld [vmem:[%s219 + $0x294] sm:$0xf]
      %v430 = vld [vmem:[%s219 + $0x298] sm:$0xf]
      %v431 = vld [vmem:[%s219 + $0x29c] sm:$0xf]
      %v432 = vld [vmem:[%s219 + $0x2a0] sm:$0xf]
      %v433 = vld [vmem:[%s219 + $0x2a4] sm:$0xf]
      %v434 = vld [vmem:[%s219 + $0x2a8] sm:$0xf]
      %v435 = vld [vmem:[%s219 + $0x2ac] sm:$0xf]
      %v436 = vld [vmem:[%s219 + $0x2b0] sm:$0xf]
      %v437 = vld [vmem:[%s219 + $0x2b4] sm:$0xf]
      %v438 = vld [vmem:[%s219 + $0x2b8] sm:$0xf]
      %v439 = vld [vmem:[%s219 + $0x2bc] sm:$0xf]
      %v464 = vunpack.c.l.b16 %v240
      %v465 = vunpack.c.h.b16 %v240
      %v466 = vunpack.c.l.b16 %v241
      %v467 = vunpack.c.h.b16 %v241
      %v468 = vunpack.c.l.b16 %v242
      %v469 = vunpack.c.h.b16 %v242
      %v470 = vunpack.c.l.b16 %v243
      %v471 = vunpack.c.h.b16 %v243
      %v472 = vunpack.c.l.b16 %v244
      %v473 = vunpack.c.h.b16 %v244
      %v474 = vunpack.c.l.b16 %v245
      %v475 = vunpack.c.l.b16 %v246
      %v476 = vunpack.c.h.b16 %v246
      %v477 = vunpack.c.l.b16 %v247
      %v478 = vunpack.c.h.b16 %v247
      %v479 = vunpack.c.l.b16 %v248
      %v480 = vunpack.c.h.b16 %v248
      %v481 = vunpack.c.l.b16 %v249
      %v482 = vunpack.c.h.b16 %v249
      %v483 = vunpack.c.l.b16 %v250
      %v484 = vunpack.c.h.b16 %v250
      %v485 = vunpack.c.l.b16 %v251
      %v486 = vunpack.c.l.b16 %v252
      %v487 = vunpack.c.h.b16 %v252
      %v488 = vunpack.c.l.b16 %v253
      %v489 = vunpack.c.h.b16 %v253
      %v490 = vunpack.c.l.b16 %v254
      %v491 = vunpack.c.h.b16 %v254
      %v492 = vunpack.c.l.b16 %v255
      %v493 = vunpack.c.h.b16 %v255
      %v494 = vunpack.c.l.b16 %v256
      %v495 = vunpack.c.h.b16 %v256
      %v496 = vunpack.c.l.b16 %v257
      %v497 = vunpack.c.l.b16 %v258
      %v498 = vunpack.c.h.b16 %v258
      %v499 = vunpack.c.l.b16 %v259
      %v500 = vunpack.c.h.b16 %v259
      %v501 = vunpack.c.l.b16 %v260
      %v502 = vunpack.c.h.b16 %v260
      %v503 = vunpack.c.l.b16 %v261
      %v504 = vunpack.c.h.b16 %v261
      %v505 = vunpack.c.l.b16 %v262
      %v506 = vunpack.c.h.b16 %v262
      %v507 = vunpack.c.l.b16 %v263
      %v508 = vpack.c.b16 %v475, %v464
      %v509 = vpack.c.b16 %v476, %v465
      %v510 = vpack.c.b16 %v477, %v466
      %v511 = vpack.c.b16 %v478, %v467
      %v512 = vpack.c.b16 %v479, %v468
      %v513 = vpack.c.b16 %v480, %v469
      %v514 = vpack.c.b16 %v481, %v470
      %v515 = vpack.c.b16 %v482, %v471
      %v516 = vpack.c.b16 %v483, %v472
      %v517 = vpack.c.b16 %v484, %v473
      %v518 = vpack.c.b16 %v485, %v474
      %v519 = vpack.c.b16 %v497, %v486
      %v520 = vpack.c.b16 %v498, %v487
      %v521 = vpack.c.b16 %v499, %v488
      %v522 = vpack.c.b16 %v500, %v489
      %v523 = vpack.c.b16 %v501, %v490
      %v524 = vpack.c.b16 %v502, %v491
      %v525 = vpack.c.b16 %v503, %v492
      %v526 = vpack.c.b16 %v504, %v493
      %v527 = vpack.c.b16 %v505, %v494
      %v528 = vpack.c.b16 %v506, %v495
      %v529 = vpack.c.b16 %v507, %v496
      %v728 = vunpack.c.l.b16 %v264
      %v729 = vunpack.c.l.b16 %v265
      %v730 = vunpack.c.l.b16 %v266
      %v731 = vunpack.c.l.b16 %v267
      %v732 = vunpack.c.l.b16 %v268
      %v733 = vunpack.c.l.b16 %v269
      %v734 = vunpack.c.l.b16 %v270
      %v735 = vunpack.c.l.b16 %v271
      %v736 = vunpack.c.l.b16 %v272
      %v737 = vunpack.c.l.b16 %v273
      %v738 = vunpack.c.l.b16 %v274
      %v739 = vunpack.c.l.b16 %v275
      %v740 = vunpack.c.l.b16 %v276
      %v741 = vunpack.c.l.b16 %v277
      %v742 = vunpack.c.l.b16 %v278
      %v743 = vunpack.c.l.b16 %v279
      %v744 = vunpack.c.l.b16 %v280
      %v745 = vunpack.c.l.b16 %v281
      %v746 = vunpack.c.l.b16 %v282
      %v747 = vunpack.c.l.b16 %v283
      %v748 = vunpack.c.l.b16 %v284
      %v749 = vunpack.c.l.b16 %v285
      %v750 = vunpack.c.l.b16 %v286
      %v751 = vunpack.c.l.b16 %v287
      %v752 = vunpack.c.l.b16 %v288
      %v753 = vunpack.c.l.b16 %v289
      %v754 = vunpack.c.l.b16 %v290
      %v755 = vunpack.c.l.b16 %v291
      %v756 = vunpack.c.l.b16 %v292
      %v757 = vunpack.c.l.b16 %v293
      %v758 = vunpack.c.l.b16 %v294
      %v759 = vunpack.c.l.b16 %v295
      %v760 = vunpack.c.l.b16 %v296
      %v761 = vunpack.c.l.b16 %v297
      %v762 = vunpack.c.l.b16 %v298
      %v763 = vunpack.c.l.b16 %v299
      %v764 = vunpack.c.l.b16 %v300
      %v765 = vunpack.c.l.b16 %v301
      %v766 = vunpack.c.l.b16 %v302
      %v767 = vunpack.c.l.b16 %v303
      %v768 = vunpack.c.l.b16 %v304
      %v769 = vunpack.c.l.b16 %v305
      %v770 = vunpack.c.l.b16 %v306
      %v771 = vunpack.c.l.b16 %v307
      %v772 = vunpack.c.l.b16 %v308
      %v773 = vunpack.c.l.b16 %v309
      %v774 = vunpack.c.l.b16 %v310
      %v775 = vunpack.c.l.b16 %v311
      %v776 = vunpack.c.l.b16 %v312
      %v777 = vunpack.c.l.b16 %v313
      %v778 = vunpack.c.l.b16 %v314
      %v779 = vunpack.c.l.b16 %v315
      %v780 = vunpack.c.l.b16 %v316
      %v781 = vunpack.c.l.b16 %v317
      %v782 = vunpack.c.l.b16 %v318
      %v783 = vunpack.c.l.b16 %v319
      %v784 = vunpack.c.l.b16 %v320
      %v785 = vunpack.c.l.b16 %v321
      %v786 = vunpack.c.l.b16 %v322
      %v787 = vunpack.c.l.b16 %v323
      %v788 = vunpack.c.l.b16 %v324
      %v789 = vunpack.c.l.b16 %v325
      %v790 = vunpack.c.l.b16 %v326
      %v791 = vunpack.c.l.b16 %v327
      %v792 = vunpack.c.l.b16 %v328
      %v793 = vunpack.c.l.b16 %v329
      %v794 = vunpack.c.l.b16 %v330
      %v795 = vunpack.c.l.b16 %v331
      %v796 = vunpack.c.l.b16 %v332
      %v797 = vunpack.c.l.b16 %v333
      %v798 = vunpack.c.l.b16 %v334
      %v799 = vunpack.c.l.b16 %v335
      %v800 = vunpack.c.l.b16 %v336
      %v801 = vunpack.c.l.b16 %v337
      %v802 = vunpack.c.l.b16 %v338
      %v803 = vunpack.c.l.b16 %v339
      %v804 = vunpack.c.l.b16 %v340
      %v805 = vunpack.c.l.b16 %v341
      %v806 = vunpack.c.l.b16 %v342
      %v807 = vunpack.c.l.b16 %v343
      %v808 = vunpack.c.l.b16 %v344
      %v809 = vunpack.c.l.b16 %v345
      %v810 = vunpack.c.l.b16 %v346
      %v811 = vunpack.c.l.b16 %v347
      %v812 = vunpack.c.l.b16 %v348
      %v813 = vunpack.c.l.b16 %v349
      %v814 = vunpack.c.l.b16 %v350
      %v815 = vunpack.c.l.b16 %v351
      %v816 = vunpack.c.l.b16 %v352
      %v817 = vunpack.c.l.b16 %v353
      %v818 = vunpack.c.l.b16 %v354
      %v819 = vunpack.c.l.b16 %v355
      %v820 = vunpack.c.l.b16 %v356
      %v821 = vunpack.c.l.b16 %v357
      %v822 = vunpack.c.l.b16 %v358
      %v823 = vunpack.c.l.b16 %v359
      %v824 = vunpack.c.l.b16 %v360
      %v825 = vunpack.c.l.b16 %v361
      %v826 = vunpack.c.l.b16 %v362
      %v827 = vunpack.c.l.b16 %v363
      %v828 = vunpack.c.l.b16 %v364
      %v829 = vunpack.c.l.b16 %v365
      %v830 = vunpack.c.l.b16 %v366
      %v831 = vunpack.c.l.b16 %v367
      %v832 = vunpack.c.l.b16 %v368
      %v833 = vunpack.c.l.b16 %v369
      %v834 = vunpack.c.l.b16 %v370
      %v835 = vunpack.c.l.b16 %v371
      %v836 = vunpack.c.l.b16 %v372
      %v837 = vunpack.c.l.b16 %v373
      %v838 = vunpack.c.l.b16 %v374
      %v839 = vunpack.c.l.b16 %v375
      %v840 = vunpack.c.l.b16 %v376
      %v841 = vunpack.c.l.b16 %v377
      %v842 = vunpack.c.l.b16 %v378
      %v843 = vunpack.c.l.b16 %v379
      %v844 = vunpack.c.l.b16 %v380
      %v845 = vunpack.c.l.b16 %v381
      %v846 = vunpack.c.l.b16 %v382
      %v847 = vunpack.c.l.b16 %v383
      %v848 = vunpack.c.l.b16 %v384
      %v849 = vunpack.c.l.b16 %v385
      %v850 = vunpack.c.l.b16 %v386
      %v851 = vunpack.c.l.b16 %v387
      %v852 = vunpack.c.l.b16 %v388
      %v853 = vunpack.c.l.b16 %v389
      %v854 = vunpack.c.l.b16 %v390
      %v855 = vunpack.c.l.b16 %v391
      %v856 = vunpack.c.l.b16 %v392
      %v857 = vunpack.c.l.b16 %v393
      %v858 = vunpack.c.l.b16 %v394
      %v859 = vunpack.c.l.b16 %v395
      %v860 = vunpack.c.l.b16 %v396
      %v861 = vunpack.c.l.b16 %v397
      %v862 = vunpack.c.l.b16 %v398
      %v863 = vunpack.c.l.b16 %v399
      %v864 = vunpack.c.l.b16 %v400
      %v865 = vunpack.c.l.b16 %v401
      %v866 = vunpack.c.l.b16 %v402
      %v867 = vunpack.c.l.b16 %v403
      %v868 = vunpack.c.l.b16 %v404
      %v869 = vunpack.c.l.b16 %v405
      %v870 = vunpack.c.l.b16 %v406
      %v871 = vunpack.c.l.b16 %v407
      %v872 = vunpack.c.l.b16 %v408
      %v873 = vunpack.c.l.b16 %v409
      %v874 = vunpack.c.l.b16 %v410
      %v875 = vunpack.c.l.b16 %v411
      %v876 = vunpack.c.l.b16 %v412
      %v877 = vunpack.c.l.b16 %v413
      %v878 = vunpack.c.l.b16 %v414
      %v879 = vunpack.c.l.b16 %v415
      %v880 = vunpack.c.l.b16 %v416
      %v881 = vunpack.c.l.b16 %v417
      %v882 = vunpack.c.l.b16 %v418
      %v883 = vunpack.c.l.b16 %v419
      %v884 = vunpack.c.l.b16 %v420
      %v885 = vunpack.c.l.b16 %v421
      %v886 = vunpack.c.l.b16 %v422
      %v887 = vunpack.c.l.b16 %v423
      %v888 = vunpack.c.l.b16 %v424
      %v889 = vunpack.c.l.b16 %v425
      %v890 = vunpack.c.l.b16 %v426
      %v891 = vunpack.c.l.b16 %v427
      %v892 = vunpack.c.l.b16 %v428
      %v893 = vunpack.c.l.b16 %v429
      %v894 = vunpack.c.l.b16 %v430
      %v895 = vunpack.c.l.b16 %v431
      %v896 = vunpack.c.l.b16 %v432
      %v897 = vunpack.c.l.b16 %v433
      %v898 = vunpack.c.l.b16 %v434
      %v899 = vunpack.c.l.b16 %v435
      %v900 = vunpack.c.l.b16 %v436
      %v901 = vunpack.c.l.b16 %v437
      %v902 = vunpack.c.l.b16 %v438
      %v903 = vunpack.c.l.b16 %v439
      %v904 = vpack.c.b16 %v729, %v728
      %v905 = vpack.c.b16 %v731, %v730
      %v906 = vpack.c.b16 %v733, %v732
      %v907 = vpack.c.b16 %v735, %v734
      %v908 = vpack.c.b16 %v737, %v736
      %v909 = vpack.c.b16 %v739, %v738
      %v910 = vpack.c.b16 %v741, %v740
      %v911 = vpack.c.b16 %v743, %v742
      %v912 = vpack.c.b16 %v745, %v744
      %v913 = vpack.c.b16 %v747, %v746
      %v914 = vpack.c.b16 %v749, %v748
      %v915 = vpack.c.b16 %v751, %v750
      %v916 = vpack.c.b16 %v753, %v752
      %v917 = vpack.c.b16 %v755, %v754
      %v918 = vpack.c.b16 %v757, %v756
      %v919 = vpack.c.b16 %v759, %v758
      %v920 = vpack.c.b16 %v761, %v760
      %v921 = vpack.c.b16 %v763, %v762
      %v922 = vpack.c.b16 %v765, %v764
      %v923 = vpack.c.b16 %v767, %v766
      %v924 = vpack.c.b16 %v769, %v768
      %v925 = vpack.c.b16 %v771, %v770
      %v926 = vpack.c.b16 %v773, %v772
      %v927 = vpack.c.b16 %v775, %v774
      %v928 = vpack.c.b16 %v777, %v776
      %v929 = vpack.c.b16 %v779, %v778
      %v930 = vpack.c.b16 %v781, %v780
      %v931 = vpack.c.b16 %v783, %v782
      %v932 = vpack.c.b16 %v785, %v784
      %v933 = vpack.c.b16 %v787, %v786
      %v934 = vpack.c.b16 %v789, %v788
      %v935 = vpack.c.b16 %v791, %v790
      %v936 = vpack.c.b16 %v793, %v792
      %v937 = vpack.c.b16 %v795, %v794
      %v938 = vpack.c.b16 %v797, %v796
      %v939 = vpack.c.b16 %v799, %v798
      %v940 = vpack.c.b16 %v801, %v800
      %v941 = vpack.c.b16 %v803, %v802
      %v942 = vpack.c.b16 %v805, %v804
      %v943 = vpack.c.b16 %v807, %v806
      %v944 = vpack.c.b16 %v809, %v808
      %v945 = vpack.c.b16 %v811, %v810
      %v946 = vpack.c.b16 %v813, %v812
      %v947 = vpack.c.b16 %v815, %v814
      %v948 = vpack.c.b16 %v817, %v816
      %v949 = vpack.c.b16 %v819, %v818
      %v950 = vpack.c.b16 %v821, %v820
      %v951 = vpack.c.b16 %v823, %v822
      %v952 = vpack.c.b16 %v825, %v824
      %v953 = vpack.c.b16 %v827, %v826
      %v954 = vpack.c.b16 %v829, %v828
      %v955 = vpack.c.b16 %v831, %v830
      %v956 = vpack.c.b16 %v833, %v832
      %v957 = vpack.c.b16 %v835, %v834
      %v958 = vpack.c.b16 %v837, %v836
      %v959 = vpack.c.b16 %v839, %v838
      %v960 = vpack.c.b16 %v841, %v840
      %v961 = vpack.c.b16 %v843, %v842
      %v962 = vpack.c.b16 %v845, %v844
      %v963 = vpack.c.b16 %v847, %v846
      %v964 = vpack.c.b16 %v849, %v848
      %v965 = vpack.c.b16 %v851, %v850
      %v966 = vpack.c.b16 %v853, %v852
      %v967 = vpack.c.b16 %v855, %v854
      %v968 = vpack.c.b16 %v857, %v856
      %v969 = vpack.c.b16 %v859, %v858
      %v970 = vpack.c.b16 %v861, %v860
      %v971 = vpack.c.b16 %v863, %v862
      %v972 = vpack.c.b16 %v865, %v864
      %v973 = vpack.c.b16 %v867, %v866
      %v974 = vpack.c.b16 %v869, %v868
      %v975 = vpack.c.b16 %v871, %v870
      %v976 = vpack.c.b16 %v873, %v872
      %v977 = vpack.c.b16 %v875, %v874
      %v978 = vpack.c.b16 %v877, %v876
      %v979 = vpack.c.b16 %v879, %v878
      %v980 = vpack.c.b16 %v881, %v880
      %v981 = vpack.c.b16 %v883, %v882
      %v982 = vpack.c.b16 %v885, %v884
      %v983 = vpack.c.b16 %v887, %v886
      %v984 = vpack.c.b16 %v889, %v888
      %v985 = vpack.c.b16 %v891, %v890
      %v986 = vpack.c.b16 %v893, %v892
      %v987 = vpack.c.b16 %v895, %v894
      %v988 = vpack.c.b16 %v897, %v896
      %v989 = vpack.c.b16 %v899, %v898
      %v990 = vpack.c.b16 %v901, %v900
      %v991 = vpack.c.b16 %v903, %v902
      %1080 = vmatpush.bf16.msra.mxu0 %v911
      %1081 = vmatpush.bf16.msra.mxu0 %v910
      %1082 = vmatpush.bf16.msra.mxu0 %v909
      %1083 = vmatpush.bf16.msra.mxu0 %v908
      %1084 = vmatpush.bf16.msra.mxu0 %v907
      %1085 = vmatpush.bf16.msra.mxu0 %v906
      %1086 = vmatpush.bf16.msra.mxu0 %v905
      %1087 = vmatpush.bf16.msra.mxu0 %v904
      %1088 = vmatmul.bf16.gmra.mxu0 %v508
      %v1089 = vpop.f32.mrf.mxu0
      %v1090 = vadd.f32 0.0, %v1089
      %v1091 = vpop.f32.mrf.mxu0
      %v1092 = vadd.f32 0.0, %v1091
      %1093 = vmatmul.bf16.gmra.mxu0 %v519
      %v1094 = vpop.f32.mrf.mxu0
      %v1095 = vadd.f32 0.0, %v1094
      %v1096 = vpop.f32.mrf.mxu0
      %v1097 = vadd.f32 0.0, %v1096
      %1098 = vdwg.mxu0
      %1099 = vmatpush.bf16.msra.mxu0 %v919
      %1100 = vmatpush.bf16.msra.mxu0 %v918
      %1101 = vmatpush.bf16.msra.mxu0 %v917
      %1102 = vmatpush.bf16.msra.mxu0 %v916
      %1103 = vmatpush.bf16.msra.mxu0 %v915
      %1104 = vmatpush.bf16.msra.mxu0 %v914
      %1105 = vmatpush.bf16.msra.mxu0 %v913
      %1106 = vmatpush.bf16.msra.mxu0 %v912
      %1107 = vmatmul.bf16.gmra.mxu0 %v509
      %v1108 = vpop.f32.mrf.mxu0
      %v1109 = vadd.f32 %v1090, %v1108
      %v1110 = vpop.f32.mrf.mxu0
      %v1111 = vadd.f32 %v1092, %v1110
      %1112 = vmatmul.bf16.gmra.mxu0 %v520
      %v1113 = vpop.f32.mrf.mxu0
      %v1114 = vadd.f32 %v1095, %v1113
      %v1115 = vpop.f32.mrf.mxu0
      %v1116 = vadd.f32 %v1097, %v1115
      %1117 = vdwg.mxu0
      %1118 = vmatpush.bf16.msra.mxu0 %v927
      %1119 = vmatpush.bf16.msra.mxu0 %v926
      %1120 = vmatpush.bf16.msra.mxu0 %v925
      %1121 = vmatpush.bf16.msra.mxu0 %v924
      %1122 = vmatpush.bf16.msra.mxu0 %v923
      %1123 = vmatpush.bf16.msra.mxu0 %v922
      %1124 = vmatpush.bf16.msra.mxu0 %v921
      %1125 = vmatpush.bf16.msra.mxu0 %v920
      %1126 = vmatmul.bf16.gmra.mxu0 %v510
      %v1127 = vpop.f32.mrf.mxu0
      %v1128 = vadd.f32 %v1109, %v1127
      %v1129 = vpop.f32.mrf.mxu0
      %v1130 = vadd.f32 %v1111, %v1129
      %1131 = vmatmul.bf16.gmra.mxu0 %v521
      %v1132 = vpop.f32.mrf.mxu0
      %v1133 = vadd.f32 %v1114, %v1132
      %v1134 = vpop.f32.mrf.mxu0
      %v1135 = vadd.f32 %v1116, %v1134
      %1136 = vdwg.mxu0
      %1137 = vmatpush.bf16.msra.mxu0 %v935
      %1138 = vmatpush.bf16.msra.mxu0 %v934
      %1139 = vmatpush.bf16.msra.mxu0 %v933
      %1140 = vmatpush.bf16.msra.mxu0 %v932
      %1141 = vmatpush.bf16.msra.mxu0 %v931
      %1142 = vmatpush.bf16.msra.mxu0 %v930
      %1143 = vmatpush.bf16.msra.mxu0 %v929
      %1144 = vmatpush.bf16.msra.mxu0 %v928
      %1145 = vmatmul.bf16.gmra.mxu0 %v511
      %v1146 = vpop.f32.mrf.mxu0
      %v1147 = vadd.f32 %v1128, %v1146
      %v1148 = vpop.f32.mrf.mxu0
      %v1149 = vadd.f32 %v1130, %v1148
      %1150 = vmatmul.bf16.gmra.mxu0 %v522
      %v1151 = vpop.f32.mrf.mxu0
      %v1152 = vadd.f32 %v1133, %v1151
      %v1153 = vpop.f32.mrf.mxu0
      %v1154 = vadd.f32 %v1135, %v1153
      %1155 = vdwg.mxu0
      %1156 = vmatpush.bf16.msra.mxu0 %v943
      %1157 = vmatpush.bf16.msra.mxu0 %v942
      %1158 = vmatpush.bf16.msra.mxu0 %v941
      %1159 = vmatpush.bf16.msra.mxu0 %v940
      %1160 = vmatpush.bf16.msra.mxu0 %v939
      %1161 = vmatpush.bf16.msra.mxu0 %v938
      %1162 = vmatpush.bf16.msra.mxu0 %v937
      %1163 = vmatpush.bf16.msra.mxu0 %v936
      %1164 = vmatmul.bf16.gmra.mxu0 %v512
      %v1165 = vpop.f32.mrf.mxu0
      %v1166 = vadd.f32 %v1147, %v1165
      %v1167 = vpop.f32.mrf.mxu0
      %v1168 = vadd.f32 %v1149, %v1167
      %1169 = vmatmul.bf16.gmra.mxu0 %v523
      %v1170 = vpop.f32.mrf.mxu0
      %v1171 = vadd.f32 %v1152, %v1170
      %v1172 = vpop.f32.mrf.mxu0
      %v1173 = vadd.f32 %v1154, %v1172
      %1174 = vdwg.mxu0
      %1175 = vmatpush.bf16.msra.mxu0 %v951
      %1176 = vmatpush.bf16.msra.mxu0 %v950
      %1177 = vmatpush.bf16.msra.mxu0 %v949
      %1178 = vmatpush.bf16.msra.mxu0 %v948
      %1179 = vmatpush.bf16.msra.mxu0 %v947
      %1180 = vmatpush.bf16.msra.mxu0 %v946
      %1181 = vmatpush.bf16.msra.mxu0 %v945
      %1182 = vmatpush.bf16.msra.mxu0 %v944
      %1183 = vmatmul.bf16.gmra.mxu0 %v513
      %v1184 = vpop.f32.mrf.mxu0
      %v1185 = vadd.f32 %v1166, %v1184
      %v1186 = vpop.f32.mrf.mxu0
      %v1187 = vadd.f32 %v1168, %v1186
      %1188 = vmatmul.bf16.gmra.mxu0 %v524
      %v1189 = vpop.f32.mrf.mxu0
      %v1190 = vadd.f32 %v1171, %v1189
      %v1191 = vpop.f32.mrf.mxu0
      %v1192 = vadd.f32 %v1173, %v1191
      %1193 = vdwg.mxu0
      %1194 = vmatpush.bf16.msra.mxu0 %v959
      %1195 = vmatpush.bf16.msra.mxu0 %v958
      %1196 = vmatpush.bf16.msra.mxu0 %v957
      %1197 = vmatpush.bf16.msra.mxu0 %v956
      %1198 = vmatpush.bf16.msra.mxu0 %v955
      %1199 = vmatpush.bf16.msra.mxu0 %v954
      %1200 = vmatpush.bf16.msra.mxu0 %v953
      %1201 = vmatpush.bf16.msra.mxu0 %v952
      %1202 = vmatmul.bf16.gmra.mxu0 %v514
      %v1203 = vpop.f32.mrf.mxu0
      %v1204 = vadd.f32 %v1185, %v1203
      %v1205 = vpop.f32.mrf.mxu0
      %v1206 = vadd.f32 %v1187, %v1205
      %1207 = vmatmul.bf16.gmra.mxu0 %v525
      %v1208 = vpop.f32.mrf.mxu0
      %v1209 = vadd.f32 %v1190, %v1208
      %v1210 = vpop.f32.mrf.mxu0
      %v1211 = vadd.f32 %v1192, %v1210
      %1212 = vdwg.mxu0
      %1213 = vmatpush.bf16.msra.mxu0 %v967
      %1214 = vmatpush.bf16.msra.mxu0 %v966
      %1215 = vmatpush.bf16.msra.mxu0 %v965
      %1216 = vmatpush.bf16.msra.mxu0 %v964
      %1217 = vmatpush.bf16.msra.mxu0 %v963
      %1218 = vmatpush.bf16.msra.mxu0 %v962
      %1219 = vmatpush.bf16.msra.mxu0 %v961
      %1220 = vmatpush.bf16.msra.mxu0 %v960
      %1221 = vmatmul.bf16.gmra.mxu0 %v515
      %v1222 = vpop.f32.mrf.mxu0
      %v1223 = vadd.f32 %v1204, %v1222
      %v1224 = vpop.f32.mrf.mxu0
      %v1225 = vadd.f32 %v1206, %v1224
      %1226 = vmatmul.bf16.gmra.mxu0 %v526
      %v1227 = vpop.f32.mrf.mxu0
      %v1228 = vadd.f32 %v1209, %v1227
      %v1229 = vpop.f32.mrf.mxu0
      %v1230 = vadd.f32 %v1211, %v1229
      %1231 = vdwg.mxu0
      %1232 = vmatpush.bf16.msra.mxu0 %v975
      %1233 = vmatpush.bf16.msra.mxu0 %v974
      %1234 = vmatpush.bf16.msra.mxu0 %v973
      %1235 = vmatpush.bf16.msra.mxu0 %v972
      %1236 = vmatpush.bf16.msra.mxu0 %v971
      %1237 = vmatpush.bf16.msra.mxu0 %v970
      %1238 = vmatpush.bf16.msra.mxu0 %v969
      %1239 = vmatpush.bf16.msra.mxu0 %v968
      %1240 = vmatmul.bf16.gmra.mxu0 %v516
      %v1241 = vpop.f32.mrf.mxu0
      %v1242 = vadd.f32 %v1223, %v1241
      %v1243 = vpop.f32.mrf.mxu0
      %v1244 = vadd.f32 %v1225, %v1243
      %1245 = vmatmul.bf16.gmra.mxu0 %v527
      %v1246 = vpop.f32.mrf.mxu0
      %v1247 = vadd.f32 %v1228, %v1246
      %v1248 = vpop.f32.mrf.mxu0
      %v1249 = vadd.f32 %v1230, %v1248
      %1250 = vdwg.mxu0
      %1251 = vmatpush.bf16.msra.mxu0 %v983
      %1252 = vmatpush.bf16.msra.mxu0 %v982
      %1253 = vmatpush.bf16.msra.mxu0 %v981
      %1254 = vmatpush.bf16.msra.mxu0 %v980
      %1255 = vmatpush.bf16.msra.mxu0 %v979
      %1256 = vmatpush.bf16.msra.mxu0 %v978
      %1257 = vmatpush.bf16.msra.mxu0 %v977
      %1258 = vmatpush.bf16.msra.mxu0 %v976
      %1259 = vmatmul.bf16.gmra.mxu0 %v517
      %v1260 = vpop.f32.mrf.mxu0
      %v1261 = vadd.f32 %v1242, %v1260
      %v1262 = vpop.f32.mrf.mxu0
      %v1263 = vadd.f32 %v1244, %v1262
      %1264 = vmatmul.bf16.gmra.mxu0 %v528
      %v1265 = vpop.f32.mrf.mxu0
      %v1266 = vadd.f32 %v1247, %v1265
      %v1267 = vpop.f32.mrf.mxu0
      %v1268 = vadd.f32 %v1249, %v1267
      %1269 = vdwg.mxu0
      %1270 = vmatpush.bf16.msra.mxu0 %v991
      %1271 = vmatpush.bf16.msra.mxu0 %v990
      %1272 = vmatpush.bf16.msra.mxu0 %v989
      %1273 = vmatpush.bf16.msra.mxu0 %v988
      %1274 = vmatpush.bf16.msra.mxu0 %v987
      %1275 = vmatpush.bf16.msra.mxu0 %v986
      %1276 = vmatpush.bf16.msra.mxu0 %v985
      %1277 = vmatpush.bf16.msra.mxu0 %v984
      %1278 = vmatmul.bf16.gmra.mxu0 %v518
      %v1279 = vpop.f32.mrf.mxu0
      %v1280 = vadd.f32 %v1261, %v1279
      %v1281 = vpop.f32.mrf.mxu0
      %v1282 = vadd.f32 %v1263, %v1281
      %1283 = vmatmul.bf16.gmra.mxu0 %v529
      %v1284 = vpop.f32.mrf.mxu0
      %v1285 = vadd.f32 %v1266, %v1284
      %v1286 = vpop.f32.mrf.mxu0
      %v1287 = vadd.f32 %v1268, %v1286
      %1288 = vdwg.mxu0
      %v1289 = vadd.f32 %v236, %v1280
      %v1290 = vadd.f32 %v237, %v1282
      %v1291 = vadd.f32 %v238, %v1285
      %v1292 = vadd.f32 %v239, %v1287
      %vm1293 = vcmask 261120
      %1294 = vst.msk [vmem:[#allocation2] sm:$0xff] %vm1293, %v1289
      %1295 = vst.msk [vmem:[#allocation2 + $0x8] sm:$0xff] %vm1293, %v1290
      %1296 = vst.msk [vmem:[#allocation2 + $0x10] sm:$0xff] %vm1293, %v1291
      %1297 = vst.msk [vmem:[#allocation2 + $0x18] sm:$0xff] %vm1293, %v1292
      // Predicated region
      $region37: #{tpu_custom_call.1} parent=31 // pred_check
        %p1298 = pneg %p227
      $region38: #{tpu_custom_call.1} parent=31 // pred_check_branch
        %1300 = sbr.rel (%p1298) target = $region40
      $region39: #{tpu_custom_call.1} parent=31 // pred_region
        %v1301 = vld [vmem:[#allocation2] sm:$0xff]
        %v1302 = vld [vmem:[#allocation2 + $0x8] sm:$0xff]
        %v1303 = vld [vmem:[#allocation2 + $0x10] sm:$0xff]
        %v1304 = vld [vmem:[#allocation2 + $0x18] sm:$0xff]
        %v1305 = vld [vmem:[%s2] sm:$0x1]
        %v1306 = vperm.slane %v1305, 0
        %v1307 = vadd.f32 %v1301, %v1306
        %v1308 = vadd.f32 %v1302, %v1306
        %v1309 = vadd.f32 %v1303, %v1306
        %v1310 = vadd.f32 %v1304, %v1306
        %v1311 = vsel %vm1293, %v1307, 0.0
        %1312 = vadd.xlane.f32.xlu0 %v1311
        %v1313 = vpop.xlane.xlu0 %1312
        %v1314 = vsel %vm1293, %v1308, 0.0
        %1315 = vadd.xlane.f32.xlu0 %v1314
        %v1316 = vpop.xlane.xlu0 %1315
        %v1317 = vsel %vm1293, %v1309, 0.0
        %1318 = vadd.xlane.f32.xlu0 %v1317
        %v1319 = vpop.xlane.xlu0 %1318
        %v1320 = vsel %vm1293, %v1310, 0.0
        %1321 = vadd.xlane.f32.xlu0 %v1320
        %v1322 = vpop.xlane.xlu0 %1321
        %v1323 = vrcp.pop 32.0
        %v1324 = vmul.f32 32.0, %v1323
        %v1325 = vsub.f32 1.0, %v1324
        %v1326 = vmul.f32 %v1323, %v1325
        %v1327 = vadd.f32 %v1323, %v1326
        %vm1328 = vweird.f32 %v1323
        %v1329 = vsel %vm1328, %v1323, %v1327
        %v1330 = vmul.f32 %v1313, %v1329
        %v1331 = vmul.f32 %v1316, %v1329
        %v1332 = vmul.f32 %v1319, %v1329
        %v1333 = vmul.f32 %v1322, %v1329
        %v1334 = vsub.f32 %v1307, %v1330
        %v1335 = vsub.f32 %v1308, %v1331
        %v1336 = vsub.f32 %v1309, %v1332
        %v1337 = vsub.f32 %v1310, %v1333
        %v1338 = vmul.f32 %v1334, %v1334
        %v1339 = vmul.f32 %v1335, %v1335
        %v1340 = vmul.f32 %v1336, %v1336
        %v1341 = vmul.f32 %v1337, %v1337
        %v1342 = vsel %vm1293, %v1338, 0.0
        %1343 = vadd.xlane.f32.xlu0 %v1342
        %v1344 = vpop.xlane.xlu0 %1343
        %v1345 = vsel %vm1293, %v1339, 0.0
        %1346 = vadd.xlane.f32.xlu0 %v1345
        %v1347 = vpop.xlane.xlu0 %1346
        %v1348 = vsel %vm1293, %v1340, 0.0
        %1349 = vadd.xlane.f32.xlu0 %v1348
        %v1350 = vpop.xlane.xlu0 %1349
        %v1351 = vsel %vm1293, %v1341, 0.0
        %1352 = vadd.xlane.f32.xlu0 %v1351
        %v1353 = vpop.xlane.xlu0 %1352
        %v1354 = vmul.f32 %v1344, %v1329
        %v1355 = vmul.f32 %v1347, %v1329
        %v1356 = vmul.f32 %v1350, %v1329
        %v1357 = vmul.f32 %v1353, %v1329
        %v1358 = vadd.f32 %v1354, 1e-05
        %v1359 = vadd.f32 %v1355, 1e-05
        %v1360 = vadd.f32 %v1356, 1e-05
        %v1361 = vadd.f32 %v1357, 1e-05
        %v1362 = vrsqrt.pop %v1358
        %v1363 = vmul.f32 %v1362, %v1358
        %v1364 = vmul.f32 %v1363, %v1362
        %v1365 = vmul.f32 0.5, %v1364
        %v1366 = vsub.f32 1.5, %v1365
        %v1367 = vmul.f32 %v1362, %v1366
        %vm1368 = vweird.f32 %v1358
        %vm1369 = vweird.f32 %v1362
        %vm1370 = vmor %vm1368, %vm1369
        %v1371 = vsel %vm1370, %v1362, %v1367
        %v1372 = vrsqrt.pop %v1359
        %v1373 = vmul.f32 %v1372, %v1359
        %v1374 = vmul.f32 %v1373, %v1372
        %v1375 = vmul.f32 0.5, %v1374
        %v1376 = vsub.f32 1.5, %v1375
        %v1377 = vmul.f32 %v1372, %v1376
        %vm1378 = vweird.f32 %v1359
        %vm1379 = vweird.f32 %v1372
        %vm1380 = vmor %vm1378, %vm1379
        %v1381 = vsel %vm1380, %v1372, %v1377
        %v1382 = vrsqrt.pop %v1360
        %v1383 = vmul.f32 %v1382, %v1360
        %v1384 = vmul.f32 %v1383, %v1382
        %v1385 = vmul.f32 0.5, %v1384
        %v1386 = vsub.f32 1.5, %v1385
        %v1387 = vmul.f32 %v1382, %v1386
        %vm1388 = vweird.f32 %v1360
        %vm1389 = vweird.f32 %v1382
        %vm1390 = vmor %vm1388, %vm1389
        %v1391 = vsel %vm1390, %v1382, %v1387
        %v1392 = vrsqrt.pop %v1361
        %v1393 = vmul.f32 %v1392, %v1361
        %v1394 = vmul.f32 %v1393, %v1392
        %v1395 = vmul.f32 0.5, %v1394
        %v1396 = vsub.f32 1.5, %v1395
        %v1397 = vmul.f32 %v1392, %v1396
        %vm1398 = vweird.f32 %v1361
        %vm1399 = vweird.f32 %v1392
        %vm1400 = vmor %vm1398, %vm1399
        %v1401 = vsel %vm1400, %v1392, %v1397
        %v1402 = vmul.f32 %v1334, %v1371
        %v1403 = vmul.f32 %v1335, %v1381
        %v1404 = vmul.f32 %v1336, %v1391
        %v1405 = vmul.f32 %v1337, %v1401
        %v1406 = vld [vmem:[%s2 + $0x1] sm:$0x1]
        %v1407 = vperm.slane %v1406, 0
        %v1408 = vmul.f32 %v1402, %v1407
        %v1409 = vmul.f32 %v1403, %v1407
        %v1410 = vmul.f32 %v1404, %v1407
        %v1411 = vmul.f32 %v1405, %v1407
        %v1412 = vld [vmem:[%s2 + $0x2] sm:$0x1]
        %v1413 = vperm.slane %v1412, 0
        %v1414 = vadd.f32 %v1408, %v1413
        %v1415 = vadd.f32 %v1409, %v1413
        %v1416 = vadd.f32 %v1410, %v1413
        %v1417 = vadd.f32 %v1411, %v1413
        %1418 = vst.msk [vmem:[%s225] sm:$0xff] %vm1293, %v1414
        %1419 = vst.msk [vmem:[%s225 + $0x8] sm:$0xff] %vm1293, %v1415
        %1420 = vst.msk [vmem:[%s225 + $0x10] sm:$0xff] %vm1293, %v1416
        %1421 = vst.msk [vmem:[%s225 + $0x18] sm:$0xff] %vm1293, %v1417
      $region40: #{tpu_custom_call.1} parent=31 // pred_fallthru
        _
      %s1422 = smul.u32 4, %s18
      %p1423 = scmp.lt.s32.totalorder %s1422, 15
      %s1424 = scalar_select %p1423, %s1422, 15
      %s1425 = smul.addr %s1424, 8
      %s1426 = scalar_lea.vmem %s3, %s1425
      // Predicated region
      $region41: #{tpu_custom_call.1} parent=31 // pred_check
        %p1427 = pneg %p119
      $region42: #{tpu_custom_call.1} parent=31 // pred_check_branch
        %1429 = sbr.rel (%p1427) target = $region44
      $region43: #{tpu_custom_call.1} parent=31 // pred_region
        %s1430 = smul.u32 4, %s18
      $region44: #{tpu_custom_call.1} parent=31 // pred_fallthru
        _
    $region32: #{tpu_custom_call.1} parent=5 // pred_fallthru
      _
    %p1431 = scmp.le.s32.totalorder 2, %s9
    // Predicated region
    $region45: #{tpu_custom_call.1} parent=5 // pred_check
      %p1432 = pneg %p1431
    $region46: #{tpu_custom_call.1} parent=5 // pred_check_branch
      %1434 = sbr.rel (%p1432) target = $region48
    $region47: #{tpu_custom_call.1} parent=5 // pred_region
      %s1435 = ssub.s32 %s9, 2
      // Predicated region
      $region49: #{tpu_custom_call.1} parent=47 // pred_check
        %p1436 = pneg %p125
      $region50: #{tpu_custom_call.1} parent=47 // pred_check_branch
        %1438 = sbr.rel (%p1436) target = $region52
      $region51: #{tpu_custom_call.1} parent=47 // pred_region
        %s1439 = smul.u32 4, %s20
        %p1440 = scmp.lt.s32.totalorder %s1439, 15
        %s1441 = scalar_select %p1440, %s1439, 15
        %s1442 = smul.addr %s1441, 8
        %s1443 = scalar_lea.vmem %s3, %s1442
      $region52: #{tpu_custom_call.1} parent=47 // pred_fallthru
        _
    $region48: #{tpu_custom_call.1} parent=5 // pred_fallthru
      _
  $region6: #{tpu_custom_call.1} parent=0 // loop_footer
    %s13 = sadd.s32 1, %s9
  $region7: #{tpu_custom_call.1} parent=0 // loop_footer_branch
    %8 = sbr.rel target = $region3
  $region8: #{tpu_custom_call.1} parent=0 // loop_exit
    _

</llo_original>
